<compile_context>
chip_gen: v7x
topology: tpu7x:2x2x1
jax: 0.10.0
libtpu: 0.0.40
codegen_flags: <defaults>
</compile_context>

<pallas_src>
import functools

import jax
import jax.numpy as jnp
from jax import lax
from jax.experimental import pallas as pl
from jax.experimental.pallas import tpu as pltpu

C_IN = 256  # fixed by nn.Conv2d(256, num_classes, kernel_size=1)


# ------------------------------ kernel helpers --------------------------------

def _softmax_classes(logits):
    # softmax over the class (sublane) axis of a (K, P) tile, all in f32.
    # reciprocal-multiply: one (1, P) reciprocal row instead of a (K, P) divide.
    m = jnp.max(logits, axis=0, keepdims=True)
    e = jnp.exp(logits - m)
    inv = 1.0 / jnp.sum(e, axis=0, keepdims=True)
    return e * inv


# --------------------------------- kernel --------------------------------------

def _vat_fused_kernel(x_ref, r_ref, w_ref, g_ref, b_ref, out_ref, *, xi, eps, it):
    x = x_ref[0]            # (C, Pp) f32   channels on sublanes, pixels on lanes
    r = r_ref[0]            # (C, Pp) f32   (rand - 0.5) noise, zero in padded lanes
    w = w_ref[...]          # (K, C)  f32
    gram = g_ref[...]       # (K, K)  f32   W @ W^T
    bias = b_ref[...]       # (K, 1)  f32

    w_bf = w.astype(jnp.bfloat16)

    # logits0 = W @ x + b   (bias added exactly once; pred = softmax(logits0)
    # is the torch.no_grad() branch, fused in).
    logits0 = jnp.dot(w_bf, x.astype(jnp.bfloat16),
                      preferred_element_type=jnp.float32) + bias        # (K, Pp)
    pred = _softmax_classes(logits0)

    # d0 = l2_normalize(rand - 0.5).  Only W @ d0 is ever needed, so fold the
    # normalization into the matmul result and never materialize d0 in (C, P).
    n2 = jnp.sum(jnp.sum(r * r, axis=1, keepdims=True), axis=0, keepdims=True)
    inv0 = 1.0 / (jnp.sqrt(n2) + 1e-8)                                   # (1, 1)
    wd = jnp.dot(w_bf, r.astype(jnp.bfloat16),
                 preferred_element_type=jnp.float32) * inv0              # (K, Pp)

    # Power iteration entirely in (K, P) space (analytic KL gradient replaces
    # autograd; xi/B factor dropped -- cancels in the L2-normalize).
    def power_iter(_, wd):
        p_hat = _softmax_classes(logits0 + xi * wd)
        gl = p_hat - pred                                                # (K, Pp)
        ggl = jnp.dot(gram, gl, preferred_element_type=jnp.float32)      # (K, Pp)
        gn2 = jnp.sum(jnp.sum(gl * ggl, axis=1, keepdims=True),
                      axis=0, keepdims=True)                             # (1, 1)
        inv = 1.0 / (jnp.sqrt(jnp.maximum(gn2, 0.0)) + 1e-8)
        return ggl * inv

    wd = lax.fori_loop(0, it, power_iter, wd, unroll=True)

    # out = conv(x + eps * d) = logits0 + eps * (W @ d)
    out_ref[0] = (logits0 + eps * wd).astype(out_ref.dtype)


# ------------------------------ forward wrapper ---------------------------------

def vat_decoder_forward(x_nchw, w_oc_ic, bias, seed, *, xi=0.1, eps=10.0, it=1):
    B, C, H, W = x_nchw.shape
    assert C == C_IN
    K = w_oc_ic.shape[0]
    P = H * W
    Pp = ((P + 127) // 128) * 128          # lane-dense pixel axis (multiple of 128)

    # VMEM budget: double-buffered x & noise blocks (f32) + bf16 dot copies +
    # a handful of (K, Pp) intermediates + slack.  Capped so the fused path
    # keeps headroom even on v7x's 64 MiB VMEM; limit set explicitly so v5e's
    # 16 MiB default scoped limit is not the binding constraint.
    # TODO(synk): pixel-tiled two-pass path for larger spatial sizes.
    need = 4 * C * Pp * 4 + 2 * C * Pp * 2 + 16 * K * Pp + (2 << 20)
    assert need <= 48 * 1024 * 1024, "spatial size too large for fused path"
    vmem_limit = int(max(need, 16 * 1024 * 1024))

    x = x_nchw.reshape(B, C, P)            # NCHW -> [B, C, P], no transpose
    # TODO(synk): torch.rand RNG stream cannot be reproduced; host-side
    # jax.random gives distributional parity only (and keeps the kernel free of
    # TPU-only PRNG primitives so it also runs under the Pallas interpreter).
    r = jax.random.uniform(jax.random.PRNGKey(seed), (B, C, P), jnp.float32) - 0.5
    if Pp != P:
        pad = ((0, 0), (0, 0), (0, Pp - P))
        x = jnp.pad(x, pad)                # zero pixels -> logits = bias there
        r = jnp.pad(r, pad)                # zero noise  -> norms/grads unaffected

    gram = w_oc_ic @ w_oc_ic.T             # (K, K), tiny, host-side
    b2 = bias.reshape(K, 1)

    kernel = functools.partial(_vat_fused_kernel, xi=xi, eps=eps, it=it)
    out = pl.pallas_call(
        kernel,
        out_shape=jax.ShapeDtypeStruct((B, K, Pp), jnp.float32),
        grid=(B,),
        in_specs=[
            pl.BlockSpec((1, C, Pp), lambda b: (b, 0, 0)),   # x
            pl.BlockSpec((1, C, Pp), lambda b: (b, 0, 0)),   # rand - 0.5
            pl.BlockSpec((K, C), lambda b: (0, 0)),          # W
            pl.BlockSpec((K, K), lambda b: (0, 0)),          # G = W @ W^T
            pl.BlockSpec((K, 1), lambda b: (0, 0)),          # bias
        ],
        out_specs=pl.BlockSpec((1, K, Pp), lambda b: (b, 0, 0)),
        compiler_params=pltpu.CompilerParams(
            dimension_semantics=("parallel",),               # megacore over batch
            vmem_limit_bytes=vmem_limit),
    )(x, r, w_oc_ic, gram, b2)
    return out[:, :, :P].reshape(B, K, H, W)                 # strip pad; NCHW


# ----------------------------------- main ----------------------------------------

if __name__ == "__main__":
    B, H, W_sp = 2, 8, 8
    num_classes = 8
    xi, eps, iterations = 0.1, 10.0, 1

    key = jax.random.PRNGKey(0)
    kx, kw, kb = jax.random.split(key, 3)

    # deterministic parameter init (Conv2d weight [K, 256, 1, 1] -> [K, 256])
    x_nchw = jax.random.normal(kx, (B, C_IN, H, W_sp), jnp.float32)
    w_oc_ic = jax.random.normal(kw, (num_classes, C_IN), jnp.float32) * 0.02
    bias = jax.random.normal(kb, (num_classes,), jnp.float32) * 0.01

    out = vat_decoder_forward(x_nchw, w_oc_ic, bias, seed=0,
                              xi=xi, eps=eps, it=iterations)
    out = jax.block_until_ready(out)
    assert out.shape == (B, num_classes, H, W_sp)
    assert bool(jnp.all(jnp.isfinite(out)))
    print("KERNEL_OK")
</pallas_src>

<mosaic_0001>
module attributes {stable_mosaic.version = 11 : i64} {
  func.func @_vat_fused_kernel(%arg0: i32, %arg1: memref<1x256x128xf32, #tpu.memory_space<vmem>>, %arg2: memref<1x256x128xf32, #tpu.memory_space<vmem>>, %arg3: memref<8x256xf32, #tpu.memory_space<vmem>>, %arg4: memref<8x8xf32, #tpu.memory_space<vmem>>, %arg5: memref<8x1xf32, #tpu.memory_space<vmem>>, %arg6: memref<1x8x128xf32, #tpu.memory_space<vmem>>) attributes {dimension_semantics = [#tpu.dimension_semantics<parallel>], iteration_bounds = array<i64: 2>, scalar_prefetch = 0 : i64, scratch_operands = 0 : i64, tpu.core_type = #tpu.core_type<tc>, window_params = [{transform_indices = @transform_0, window_bounds = array<i64: 1, 256, 128>}, {transform_indices = @transform_1, window_bounds = array<i64: 1, 256, 128>}, {pipeline_mode = #tpu.pipeline_mode<synchronous>, transform_indices = @transform_2, window_bounds = array<i64: 8, 256>}, {pipeline_mode = #tpu.pipeline_mode<synchronous>, transform_indices = @transform_3, window_bounds = array<i64: 8, 8>}, {pipeline_mode = #tpu.pipeline_mode<synchronous>, transform_indices = @transform_4, window_bounds = array<i64: 8, 1>}, {transform_indices = @transform_5, window_bounds = array<i64: 1, 8, 128>}]} {
    %c0 = arith.constant 0 : index
    %c0_0 = arith.constant 0 : index
    %c0_1 = arith.constant 0 : index
    %0 = vector.load %arg1[%c0, %c0_0, %c0_1] : memref<1x256x128xf32, #tpu.memory_space<vmem>>, vector<1x256x128xf32>
    %1 = vector.shape_cast %0 : vector<1x256x128xf32> to vector<256x128xf32>
    %c0_2 = arith.constant 0 : index
    %c0_3 = arith.constant 0 : index
    %c0_4 = arith.constant 0 : index
    %2 = vector.load %arg2[%c0_2, %c0_3, %c0_4] : memref<1x256x128xf32, #tpu.memory_space<vmem>>, vector<1x256x128xf32>
    %3 = vector.shape_cast %2 : vector<1x256x128xf32> to vector<256x128xf32>
    %c0_5 = arith.constant 0 : index
    %c0_6 = arith.constant 0 : index
    %4 = vector.load %arg3[%c0_5, %c0_6] : memref<8x256xf32, #tpu.memory_space<vmem>>, vector<8x256xf32>
    %c0_7 = arith.constant 0 : index
    %c0_8 = arith.constant 0 : index
    %5 = vector.load %arg4[%c0_7, %c0_8] : memref<8x8xf32, #tpu.memory_space<vmem>>, vector<8x8xf32>
    %c0_9 = arith.constant 0 : index
    %c0_10 = arith.constant 0 : index
    %6 = vector.load %arg5[%c0_9, %c0_10] : memref<8x1xf32, #tpu.memory_space<vmem>>, vector<8x1xf32>
    %7 = arith.truncf %4 : vector<8x256xf32> to vector<8x256xbf16>
    %8 = arith.truncf %1 : vector<256x128xf32> to vector<256x128xbf16>
    %cst = arith.constant dense<0.000000e+00> : vector<8x128xf32>
    %9 = tpu.matmul %7, %8, %cst {dimension_numbers = #tpu.dot_dimension_numbers<[1], [0], [0], [1], [0, 0, 1, 1], [], []>} : vector<8x256xbf16>, vector<256x128xbf16>, vector<8x128xf32> -> vector<8x128xf32>
    %10 = vector.broadcast %6 : vector<8x1xf32> to vector<8x128xf32>
    %11 = arith.addf %9, %10 : vector<8x128xf32>
    %cst_11 = arith.constant dense<0xFF800000> : vector<128xf32>
    %12 = vector.multi_reduction <maximumf>, %11, %cst_11 [0] : vector<8x128xf32> to vector<128xf32>
    %13 = vector.shape_cast %12 : vector<128xf32> to vector<1x128xf32>
    %14 = vector.broadcast %13 : vector<1x128xf32> to vector<8x128xf32>
    %15 = arith.subf %11, %14 : vector<8x128xf32>
    %16 = math.exp %15 : vector<8x128xf32>
    %cst_12 = arith.constant dense<0.000000e+00> : vector<128xf32>
    %17 = vector.multi_reduction <add>, %16, %cst_12 [0] : vector<8x128xf32> to vector<128xf32>
    %18 = vector.shape_cast %17 : vector<128xf32> to vector<1x128xf32>
    %cst_13 = arith.constant 1.000000e+00 : f32
    %19 = vector.broadcast %cst_13 : f32 to vector<1x128xf32>
    %20 = arith.divf %19, %18 : vector<1x128xf32>
    %21 = vector.broadcast %20 : vector<1x128xf32> to vector<8x128xf32>
    %22 = arith.mulf %16, %21 : vector<8x128xf32>
    %23 = arith.mulf %3, %3 : vector<256x128xf32>
    %cst_14 = arith.constant dense<0.000000e+00> : vector<256xf32>
    %24 = vector.multi_reduction <add>, %23, %cst_14 [1] : vector<256x128xf32> to vector<256xf32>
    %25 = vector.shape_cast %24 : vector<256xf32> to vector<256x1xf32>
    %cst_15 = arith.constant dense<0.000000e+00> : vector<1xf32>
    %26 = vector.multi_reduction <add>, %25, %cst_15 [0] : vector<256x1xf32> to vector<1xf32>
    %27 = vector.shape_cast %26 : vector<1xf32> to vector<1x1xf32>
    %28 = math.sqrt %27 : vector<1x1xf32>
    %cst_16 = arith.constant 9.99999993E-9 : f32
    %29 = vector.broadcast %cst_16 : f32 to vector<1x1xf32>
    %30 = arith.addf %28, %29 : vector<1x1xf32>
    %cst_17 = arith.constant 1.000000e+00 : f32
    %31 = vector.broadcast %cst_17 : f32 to vector<1x1xf32>
    %32 = arith.divf %31, %30 : vector<1x1xf32>
    %33 = arith.truncf %3 : vector<256x128xf32> to vector<256x128xbf16>
    %cst_18 = arith.constant dense<0.000000e+00> : vector<8x128xf32>
    %34 = tpu.matmul %7, %33, %cst_18 {dimension_numbers = #tpu.dot_dimension_numbers<[1], [0], [0], [1], [0, 0, 1, 1], [], []>} : vector<8x256xbf16>, vector<256x128xbf16>, vector<8x128xf32> -> vector<8x128xf32>
    %35 = vector.broadcast %32 : vector<1x1xf32> to vector<8x128xf32>
    %36 = arith.mulf %34, %35 : vector<8x128xf32>
    %c0_i32 = arith.constant 0 : i32
    %cst_19 = arith.constant 1.000000e-01 : f32
    %37 = vector.broadcast %cst_19 : f32 to vector<8x128xf32>
    %38 = arith.mulf %37, %36 : vector<8x128xf32>
    %39 = arith.addf %11, %38 : vector<8x128xf32>
    %cst_20 = arith.constant dense<0xFF800000> : vector<128xf32>
    %40 = vector.multi_reduction <maximumf>, %39, %cst_20 [0] : vector<8x128xf32> to vector<128xf32>
    %41 = vector.shape_cast %40 : vector<128xf32> to vector<1x128xf32>
    %42 = vector.broadcast %41 : vector<1x128xf32> to vector<8x128xf32>
    %43 = arith.subf %39, %42 : vector<8x128xf32>
    %44 = math.exp %43 : vector<8x128xf32>
    %cst_21 = arith.constant dense<0.000000e+00> : vector<128xf32>
    %45 = vector.multi_reduction <add>, %44, %cst_21 [0] : vector<8x128xf32> to vector<128xf32>
    %46 = vector.shape_cast %45 : vector<128xf32> to vector<1x128xf32>
    %cst_22 = arith.constant 1.000000e+00 : f32
    %47 = vector.broadcast %cst_22 : f32 to vector<1x128xf32>
    %48 = arith.divf %47, %46 : vector<1x128xf32>
    %49 = vector.broadcast %48 : vector<1x128xf32> to vector<8x128xf32>
    %50 = arith.mulf %44, %49 : vector<8x128xf32>
    %51 = arith.subf %50, %22 : vector<8x128xf32>
    %cst_23 = arith.constant dense<0.000000e+00> : vector<8x128xf32>
    %52 = tpu.matmul %5, %51, %cst_23 {dimension_numbers = #tpu.dot_dimension_numbers<[1], [0], [0], [1], [0, 0, 1, 1], [], []>} : vector<8x8xf32>, vector<8x128xf32>, vector<8x128xf32> -> vector<8x128xf32>
    %53 = arith.mulf %51, %52 : vector<8x128xf32>
    %cst_24 = arith.constant dense<0.000000e+00> : vector<8xf32>
    %54 = vector.multi_reduction <add>, %53, %cst_24 [1] : vector<8x128xf32> to vector<8xf32>
    %55 = vector.shape_cast %54 : vector<8xf32> to vector<8x1xf32>
    %cst_25 = arith.constant dense<0.000000e+00> : vector<1xf32>
    %56 = vector.multi_reduction <add>, %55, %cst_25 [0] : vector<8x1xf32> to vector<1xf32>
    %57 = vector.shape_cast %56 : vector<1xf32> to vector<1x1xf32>
    %cst_26 = arith.constant 0.000000e+00 : f32
    %58 = vector.broadcast %cst_26 : f32 to vector<1x1xf32>
    %59 = arith.maximumf %57, %58 : vector<1x1xf32>
    %60 = math.sqrt %59 : vector<1x1xf32>
    %cst_27 = arith.constant 9.99999993E-9 : f32
    %61 = vector.broadcast %cst_27 : f32 to vector<1x1xf32>
    %62 = arith.addf %60, %61 : vector<1x1xf32>
    %cst_28 = arith.constant 1.000000e+00 : f32
    %63 = vector.broadcast %cst_28 : f32 to vector<1x1xf32>
    %64 = arith.divf %63, %62 : vector<1x1xf32>
    %65 = vector.broadcast %64 : vector<1x1xf32> to vector<8x128xf32>
    %66 = arith.mulf %52, %65 : vector<8x128xf32>
    %cst_29 = arith.constant 1.000000e+01 : f32
    %67 = vector.broadcast %cst_29 : f32 to vector<8x128xf32>
    %68 = arith.mulf %67, %66 : vector<8x128xf32>
    %69 = arith.addf %11, %68 : vector<8x128xf32>
    %c0_30 = arith.constant 0 : index
    %c0_31 = arith.constant 0 : index
    %c0_32 = arith.constant 0 : index
    %70 = vector.load %arg6[%c0_30, %c0_31, %c0_32] : memref<1x8x128xf32, #tpu.memory_space<vmem>>, vector<1x8x128xf32>
    %71 = vector.shape_cast %70 : vector<1x8x128xf32> to vector<8x128xf32>
    %72 = vector.shape_cast %69 : vector<8x128xf32> to vector<1x8x128xf32>
    tpu.vector_store %arg6[%c0_30, %c0_31, %c0_32], %72 {strides = array<i32>} : memref<1x8x128xf32, #tpu.memory_space<vmem>>, vector<1x8x128xf32>,
    return
  }
  func.func @transform_0(%arg0: i32) -> (i32, i32, i32) {
    %c0_i32 = arith.constant 0 : i32
    %c0_i32_0 = arith.constant 0 : i32
    %c0_i32_1 = arith.constant 0 : i32
    return %arg0, %c0_i32, %c0_i32_0 : i32, i32, i32
  }
  func.func @transform_1(%arg0: i32) -> (i32, i32, i32) {
    %c0_i32 = arith.constant 0 : i32
    %c0_i32_0 = arith.constant 0 : i32
    %c0_i32_1 = arith.constant 0 : i32
    return %arg0, %c0_i32, %c0_i32_0 : i32, i32, i32
  }
  func.func @transform_2(%arg0: i32) -> (i32, i32) {
    %c0_i32 = arith.constant 0 : i32
    %c0_i32_0 = arith.constant 0 : i32
    %c0_i32_1 = arith.constant 0 : i32
    return %c0_i32, %c0_i32_0 : i32, i32
  }
  func.func @transform_3(%arg0: i32) -> (i32, i32) {
    %c0_i32 = arith.constant 0 : i32
    %c0_i32_0 = arith.constant 0 : i32
    %c0_i32_1 = arith.constant 0 : i32
    return %c0_i32, %c0_i32_0 : i32, i32
  }
  func.func @transform_4(%arg0: i32) -> (i32, i32) {
    %c0_i32 = arith.constant 0 : i32
    %c0_i32_0 = arith.constant 0 : i32
    %c0_i32_1 = arith.constant 0 : i32
    return %c0_i32, %c0_i32_0 : i32, i32
  }
  func.func @transform_5(%arg0: i32) -> (i32, i32, i32) {
    %c0_i32 = arith.constant 0 : i32
    %c0_i32_0 = arith.constant 0 : i32
    %c0_i32_1 = arith.constant 0 : i32
    return %arg0, %c0_i32, %c0_i32_0 : i32, i32, i32
  }
}

</mosaic_0001>

<llo_original>
// kernel: tpu_custom_call.1
$region0: #{tpu_custom_call.1}
  #allocation0 [shape = 'u32[]', space=smem, size = 0x4, offset = 0x4, fixed_abs, tag = 'smem constant byte address 0x4 - core index']
  #allocation1 [shape = 'u32[144,128]{1,0:T(1,128)}', space=vmem, size = 0x12000, scoped, tag = 'internal scratch']
  %s0 = inlined_call_operand.hbm [shape: f32[2,256,128], index: 0, kind: input, shape index: {}]
  %s1 = inlined_call_operand.hbm [shape: f32[2,256,128], index: 1, kind: input, shape index: {}]
  %s2 = inlined_call_operand.vmem [shape: f32[8,256], index: 2, kind: input, shape index: {}]
  %s3 = inlined_call_operand.hbm [shape: f32[8,8], index: 3, kind: input, shape index: {}]
  %s4 = inlined_call_operand.vmem [shape: f32[8,1], index: 4, kind: input, shape index: {}]
  %s5 = inlined_call_operand.hbm [shape: f32[2,8,128], index: 5, kind: output, shape index: {}]
  %s6 = sld [smem:[#allocation0]]
  $region65: #{tpu_custom_call.1} parent=0
    _
  %s8 = ssub.s32 1, %s6
  %s9 = scalar_select 0, %s8, %s6
  $region1: #{tpu_custom_call.1} parent=0
    #allocation2 [shape = 'u8[262144]{0}', space=vmem, size = 0x40000, scoped, tag = 'input window, operand 0']
    #allocation3 [shape = 's32[2]{0}', space=sflag, size = 0x8, scoped, tag = 'scoped memory for tpu_custom_call.1']
    #allocation4 [shape = 's32[2]{0}', space=sflag, size = 0x8, scoped, tag = 'scoped memory for tpu_custom_call.1']
    #allocation5 [shape = 'u8[262144]{0}', space=vmem, size = 0x40000, scoped, tag = 'input window, operand 1']
    #allocation6 [shape = 's32[2]{0}', space=sflag, size = 0x8, scoped, tag = 'scoped memory for tpu_custom_call.1']
    #allocation7 [shape = 'u8[4096]{0}', space=vmem, size = 0x1000, scoped, tag = 'input window, operand 3, single buffered']
    #allocation8 [shape = 'u8[8192]{0}', space=vmem, size = 0x2000, scoped, tag = 'output window, operand 0']
    %10 = vsyncpa [#allocation3], 0
    %s11 = scalar_lea.sflag [#allocation3], 1
    %12 = vsyncpa %s11, 0
    %13 = vsyncpa [#allocation6], 0
    %s14 = scalar_lea.sflag [#allocation6], 1
    %15 = vsyncpa %s14, 0
    %16 = vsyncpa [#allocation4], 0
    %s17 = scalar_lea.sflag [#allocation4], 1
    %18 = vsyncpa %s17, 0
    loop: start=0, step=1, limit=4
    $region2: #{tpu_custom_call.1} parent=1 // loop_pre_header
      _
    $region3: #{tpu_custom_call.1} parent=1 // loop_header
      %s20 = sphi 0, %s24
      %p21 = scmp.ge.s32.totalorder %s20, 4
      %s30 = sphi 0, %s32
      %s33 = sphi 0, %s30
      %s34 = sphi 0, %s33
      %s50 = sphi 0, %s34
      %s56 = sphi 0, %s58
      %s59 = sphi 0, %s56
      %s60 = sphi 0, %s59
      %s76 = sphi 0, %s60
      %s80 = sphi 0, %s80
      %s82 = sphi 0, %s80
      %s83 = sphi 0, %s82
      %s97 = sphi 0, %s83
      %s101 = sphi 0, %s101
      %s103 = sphi 0, %s101
      %s104 = sphi 0, %s103
      %s118 = sphi 0, %s104
      %s122 = sphi 0, %s122
      %s124 = sphi 0, %s122
      %s125 = sphi 0, %s124
      %s139 = sphi 0, %s125
      %s145 = sphi 0, %s147
      %s148 = sphi 0, %s145
      %s149 = sphi 0, %s148
      %s165 = sphi 0, %s149
    $region4: #{tpu_custom_call.1} parent=1 // loop_header_branch
      %23 = sbr.rel (%p21) target = $region8
    $region5: #{tpu_custom_call.1} parent=1 // loop_body
      %s25 = ssub.s32 %s20, 1
      %s26 = ssub.s32 %s20, 2
      %s27 = sadd.s32 %s20, 1
      %s28 = ssub.s32 %s20, %s27
      %p29 = scmp.eq.s32.totalorder %s28, 0
      %s31 = sadd.s32 %s30, 1
      %s32 = scalar_select %p29, %s30, %s31
      %p35 = pneg %p29
      %p36 = scmp.eq.s32.totalorder %s20, 1
      %p37 = por %p35, %p36
      %p38 = scmp.ne.s32.totalorder %s30, %s33
      %p39 = scmp.eq.s32.totalorder %s20, 0
      %p40 = por %p38, %p39
      %p41 = scmp.ne.s32.totalorder %s30, %s33
      %p42 = scmp.eq.s32.totalorder %s25, 1
      %p43 = por %p41, %p42
      %p44 = scmp.ne.s32.totalorder %s33, %s34
      %p45 = scmp.eq.s32.totalorder %s25, 0
      %p46 = por %p44, %p45
      %p47 = scmp.ne.s32.totalorder %s33, %s34
      %p48 = scmp.eq.s32.totalorder %s26, 1
      %p49 = por %p47, %p48
      %p51 = scmp.ne.s32.totalorder %s34, %s50
      %p52 = scmp.eq.s32.totalorder %s26, 0
      %p53 = por %p51, %p52
      %s54 = ssub.s32 %s20, %s27
      %p55 = scmp.eq.s32.totalorder %s54, 0
      %s57 = sadd.s32 %s56, 1
      %s58 = scalar_select %p55, %s56, %s57
      %p61 = pneg %p55
      %p62 = scmp.eq.s32.totalorder %s20, 1
      %p63 = por %p61, %p62
      %p64 = scmp.ne.s32.totalorder %s56, %s59
      %p65 = scmp.eq.s32.totalorder %s20, 0
      %p66 = por %p64, %p65
      %p67 = scmp.ne.s32.totalorder %s56, %s59
      %p68 = scmp.eq.s32.totalorder %s25, 1
      %p69 = por %p67, %p68
      %p70 = scmp.ne.s32.totalorder %s59, %s60
      %p71 = scmp.eq.s32.totalorder %s25, 0
      %p72 = por %p70, %p71
      %p73 = scmp.ne.s32.totalorder %s59, %s60
      %p74 = scmp.eq.s32.totalorder %s26, 1
      %p75 = por %p73, %p74
      %p77 = scmp.ne.s32.totalorder %s60, %s76
      %p78 = scmp.eq.s32.totalorder %s26, 0
      %p79 = por %p77, %p78
      %s81 = sadd.s32 %s80, 1
      %p84 = scmp.eq.s32.totalorder %s20, 1
      %p85 = scmp.ne.s32.totalorder %s80, %s82
      %p86 = scmp.eq.s32.totalorder %s20, 0
      %p87 = por %p85, %p86
      %p88 = scmp.ne.s32.totalorder %s80, %s82
      %p89 = scmp.eq.s32.totalorder %s25, 1
      %p90 = por %p88, %p89
      %p91 = scmp.ne.s32.totalorder %s82, %s83
      %p92 = scmp.eq.s32.totalorder %s25, 0
      %p93 = por %p91, %p92
      %p94 = scmp.ne.s32.totalorder %s82, %s83
      %p95 = scmp.eq.s32.totalorder %s26, 1
      %p96 = por %p94, %p95
      %p98 = scmp.ne.s32.totalorder %s83, %s97
      %p99 = scmp.eq.s32.totalorder %s26, 0
      %p100 = por %p98, %p99
      %s102 = sadd.s32 %s101, 1
      %p105 = scmp.eq.s32.totalorder %s20, 1
      %p106 = scmp.ne.s32.totalorder %s101, %s103
      %p107 = scmp.eq.s32.totalorder %s20, 0
      %p108 = por %p106, %p107
      %p109 = scmp.ne.s32.totalorder %s101, %s103
      %p110 = scmp.eq.s32.totalorder %s25, 1
      %p111 = por %p109, %p110
      %p112 = scmp.ne.s32.totalorder %s103, %s104
      %p113 = scmp.eq.s32.totalorder %s25, 0
      %p114 = por %p112, %p113
      %p115 = scmp.ne.s32.totalorder %s103, %s104
      %p116 = scmp.eq.s32.totalorder %s26, 1
      %p117 = por %p115, %p116
      %p119 = scmp.ne.s32.totalorder %s104, %s118
      %p120 = scmp.eq.s32.totalorder %s26, 0
      %p121 = por %p119, %p120
      %s123 = sadd.s32 %s122, 1
      %p126 = scmp.eq.s32.totalorder %s20, 1
      %p127 = scmp.ne.s32.totalorder %s122, %s124
      %p128 = scmp.eq.s32.totalorder %s20, 0
      %p129 = por %p127, %p128
      %p130 = scmp.ne.s32.totalorder %s122, %s124
      %p131 = scmp.eq.s32.totalorder %s25, 1
      %p132 = por %p130, %p131
      %p133 = scmp.ne.s32.totalorder %s124, %s125
      %p134 = scmp.eq.s32.totalorder %s25, 0
      %p135 = por %p133, %p134
      %p136 = scmp.ne.s32.totalorder %s124, %s125
      %p137 = scmp.eq.s32.totalorder %s26, 1
      %p138 = por %p136, %p137
      %p140 = scmp.ne.s32.totalorder %s125, %s139
      %p141 = scmp.eq.s32.totalorder %s26, 0
      %p142 = por %p140, %p141
      %s143 = ssub.s32 %s20, %s27
      %p144 = scmp.eq.s32.totalorder %s143, 0
      %s146 = sadd.s32 %s145, 1
      %s147 = scalar_select %p144, %s145, %s146
      %p150 = pneg %p144
      %p151 = scmp.eq.s32.totalorder %s20, 1
      %p152 = por %p150, %p151
      %p153 = scmp.ne.s32.totalorder %s145, %s148
      %p154 = scmp.eq.s32.totalorder %s20, 0
      %p155 = por %p153, %p154
      %p156 = scmp.ne.s32.totalorder %s145, %s148
      %p157 = scmp.eq.s32.totalorder %s25, 1
      %p158 = por %p156, %p157
      %p159 = scmp.ne.s32.totalorder %s148, %s149
      %p160 = scmp.eq.s32.totalorder %s25, 0
      %p161 = por %p159, %p160
      %p162 = scmp.ne.s32.totalorder %s148, %s149
      %p163 = scmp.eq.s32.totalorder %s26, 1
      %p164 = por %p162, %p163
      %p166 = scmp.ne.s32.totalorder %s149, %s165
      %p167 = scmp.eq.s32.totalorder %s26, 0
      %p168 = por %p166, %p167
      %p169 = scmp.le.s32.totalorder 1, %s20
      %p170 = scmp.lt.s32.totalorder %s20, 3
      %p171 = pnand %p169, %p170
      %p172 = pneg %p171
      // Predicated region
      $region9: #{tpu_custom_call.1} parent=5 // pred_check
        _
      $region10: #{tpu_custom_call.1} parent=5 // pred_check_branch
        %174 = sbr.rel (%p171) target = $region12
      $region11: #{tpu_custom_call.1} parent=5 // pred_region
        %s175 = ssub.s32 %s20, 1
        // Predicated region
        $region13: #{tpu_custom_call.1} parent=11 // pred_check
          %p176 = pneg %p93
        $region14: #{tpu_custom_call.1} parent=11 // pred_check_branch
          %178 = sbr.rel (%p176) target = $region16
        $region15: #{tpu_custom_call.1} parent=11 // pred_region
          _
        $region16: #{tpu_custom_call.1} parent=11 // pred_fallthru
          _
        // Predicated region
        $region17: #{tpu_custom_call.1} parent=11 // pred_check
          %p179 = pneg %p114
        $region18: #{tpu_custom_call.1} parent=11 // pred_check_branch
          %181 = sbr.rel (%p179) target = $region20
        $region19: #{tpu_custom_call.1} parent=11 // pred_region
          %s183 = ssub.s32 128, 128
          %184 = vsyncadd [#allocation6], %s183
          %s186 = sshll.u32 [#allocation7], 4
          %s187 = int_to_ptr.vmem [resolvable:$true] %s186
          %189 = dma.hbm_to_vmem [thread:$0]  %s3, 128, %s187, [#allocation6]
        $region20: #{tpu_custom_call.1} parent=11 // pred_fallthru
          _
        // Predicated region
        $region21: #{tpu_custom_call.1} parent=11 // pred_check
          %p190 = pneg %p135
        $region22: #{tpu_custom_call.1} parent=11 // pred_check_branch
          %192 = sbr.rel (%p190) target = $region24
        $region23: #{tpu_custom_call.1} parent=11 // pred_region
          _
        $region24: #{tpu_custom_call.1} parent=11 // pred_fallthru
          _
      $region12: #{tpu_custom_call.1} parent=5 // pred_fallthru
        _
      %p193 = scmp.lt.s32.totalorder %s20, 2
      // Predicated region
      $region25: #{tpu_custom_call.1} parent=5 // pred_check
        %p194 = pneg %p193
      $region26: #{tpu_custom_call.1} parent=5 // pred_check_branch
        %196 = sbr.rel (%p194) target = $region28
      $region27: #{tpu_custom_call.1} parent=5 // pred_region
        // Predicated region
        $region29: #{tpu_custom_call.1} parent=27 // pred_check
          %p197 = pneg %p40
        $region30: #{tpu_custom_call.1} parent=27 // pred_check_branch
          %199 = sbr.rel (%p197) target = $region32
        $region31: #{tpu_custom_call.1} parent=27 // pred_region
          %s200 = sand.u32 %s30, 1
          %s201 = scalar_lea.sflag [#allocation3], %s200
          %s202 = sand.u32 %s30, 1
          %s203 = smul.addr %s202, 256
          %s204 = scalar_lea.vmem [#allocation2], %s203
          %s206 = ssub.s32 4096, 4096
          %207 = vsyncadd %s201, %s206
          %s208 = smul.addr %s20, 32
          %s209 = smul.addr %s208, 128
          %s210 = scalar_lea.hbm %s0, %s209
          %s211 = sshll.u32 %s204, 4
          %s212 = int_to_ptr.vmem [resolvable:$true] %s211
          %217 = dma.hbm_to_vmem [thread:$0]  %s210, 4096, %s212, %s201, 128, 128, 8
        $region32: #{tpu_custom_call.1} parent=27 // pred_fallthru
          _
        // Predicated region
        $region33: #{tpu_custom_call.1} parent=27 // pred_check
          %p218 = pneg %p66
        $region34: #{tpu_custom_call.1} parent=27 // pred_check_branch
          %220 = sbr.rel (%p218) target = $region36
        $region35: #{tpu_custom_call.1} parent=27 // pred_region
          %s221 = sand.u32 %s20, 1
          %s222 = scalar_lea.sflag [#allocation6], %s221
          %s223 = sand.u32 %s56, 1
          %s224 = smul.addr %s223, 256
          %s225 = scalar_lea.vmem [#allocation5], %s224
          %s227 = ssub.s32 4096, 4096
          %228 = vsyncadd %s222, %s227
          %s229 = smul.addr %s20, 32
          %s230 = smul.addr %s229, 128
          %s231 = scalar_lea.hbm %s1, %s230
          %s232 = sshll.u32 %s225, 4
          %s233 = int_to_ptr.vmem [resolvable:$true] %s232
          %238 = dma.hbm_to_vmem [thread:$0]  %s231, 4096, %s233, %s222, 128, 128, 8
        $region36: #{tpu_custom_call.1} parent=27 // pred_fallthru
          _
      $region28: #{tpu_custom_call.1} parent=5 // pred_fallthru
        _
      %p239 = scmp.le.s32.totalorder 1, %s20
      %p240 = scmp.lt.s32.totalorder %s20, 3
      %p241 = pnand %p239, %p240
      %p242 = pneg %p241
      // Predicated region
      $region37: #{tpu_custom_call.1} parent=5 // pred_check
        _
      $region38: #{tpu_custom_call.1} parent=5 // pred_check_branch
        %244 = sbr.rel (%p241) target = $region40
      $region39: #{tpu_custom_call.1} parent=5 // pred_region
        %s245 = ssub.s32 %s20, 1
        %s246 = sand.u32 %s33, 1
        %s247 = scalar_lea.sflag [#allocation3], %s246
        %s248 = sand.u32 %s33, 1
        %s249 = smul.addr %s248, 256
        %s250 = scalar_lea.vmem [#allocation2], %s249
        // Predicated region
        $region41: #{tpu_custom_call.1} parent=39 // pred_check
          %p251 = pneg %p46
        $region42: #{tpu_custom_call.1} parent=39 // pred_check_branch
          %253 = sbr.rel (%p251) target = $region44
        $region43: #{tpu_custom_call.1} parent=39 // pred_region
          %254 = dma.done %s247, 4096
        $region44: #{tpu_custom_call.1} parent=39 // pred_fallthru
          _
        %s255 = sand.u32 %s25, 1
        %s256 = scalar_lea.sflag [#allocation6], %s255
        %s257 = sand.u32 %s59, 1
        %s258 = smul.addr %s257, 256
        %s259 = scalar_lea.vmem [#allocation5], %s258
        // Predicated region
        $region45: #{tpu_custom_call.1} parent=39 // pred_check
          %p260 = pneg %p72
        $region46: #{tpu_custom_call.1} parent=39 // pred_check_branch
          %262 = sbr.rel (%p260) target = $region48
        $region47: #{tpu_custom_call.1} parent=39 // pred_region
          %263 = dma.done %s256, 4096
        $region48: #{tpu_custom_call.1} parent=39 // pred_fallthru
          _
        // Predicated region
        $region49: #{tpu_custom_call.1} parent=39 // pred_check
          %p264 = pneg %p114
        $region50: #{tpu_custom_call.1} parent=39 // pred_check_branch
          %266 = sbr.rel (%p264) target = $region52
        $region51: #{tpu_custom_call.1} parent=39 // pred_region
          %267 = dma.done [#allocation6], 128
        $region52: #{tpu_custom_call.1} parent=39 // pred_fallthru
          _
        %s268 = sand.u32 %s33, 1
        %s269 = scalar_lea.sflag [#allocation3], %s268
        %s270 = sand.u32 %s33, 1
        %s271 = smul.addr %s270, 256
        %s272 = scalar_lea.vmem [#allocation2], %s271
        %p273 = pneg %p46
        %p274 = pneg %p43
        %s275 = sand.u32 %s25, 1
        %s276 = scalar_lea.sflag [#allocation6], %s275
        %s277 = sand.u32 %s59, 1
        %s278 = smul.addr %s277, 256
        %s279 = scalar_lea.vmem [#allocation5], %s278
        %p280 = pneg %p72
        %p281 = pneg %p69
        %p282 = pneg %p93
        %p283 = pneg %p90
        %p284 = pneg %p114
        %p285 = pneg %p111
        %p286 = pneg %p135
        %p287 = pneg %p132
        %p288 = pneg %p161
        %p289 = pneg %p158
        %s290 = sand.u32 %s148, 1
        %s291 = scalar_lea.sflag [#allocation4], %s290
        %s292 = sand.u32 %s148, 1
        %s293 = smul.addr %s292, 8
        %s294 = scalar_lea.vmem [#allocation8], %s293
        %v296 = vld [vmem:[%s250] sm:$0xff]
        %v297 = vld [vmem:[%s250 + $0x8] sm:$0xff]
        %v298 = vld [vmem:[%s250 + $0x10] sm:$0xff]
        %v299 = vld [vmem:[%s250 + $0x18] sm:$0xff]
        %v300 = vld [vmem:[%s250 + $0x20] sm:$0xff]
        %v301 = vld [vmem:[%s250 + $0x28] sm:$0xff]
        %v302 = vld [vmem:[%s250 + $0x30] sm:$0xff]
        %v303 = vld [vmem:[%s250 + $0x38] sm:$0xff]
        %v304 = vld [vmem:[%s250 + $0x40] sm:$0xff]
        %v305 = vld [vmem:[%s250 + $0x48] sm:$0xff]
        %v306 = vld [vmem:[%s250 + $0x50] sm:$0xff]
        %v307 = vld [vmem:[%s250 + $0x58] sm:$0xff]
        %v308 = vld [vmem:[%s250 + $0x60] sm:$0xff]
        %v309 = vld [vmem:[%s250 + $0x68] sm:$0xff]
        %v310 = vld [vmem:[%s250 + $0x70] sm:$0xff]
        %v311 = vld [vmem:[%s250 + $0x78] sm:$0xff]
        %v312 = vld [vmem:[%s250 + $0x80] sm:$0xff]
        %v313 = vld [vmem:[%s250 + $0x88] sm:$0xff]
        %v314 = vld [vmem:[%s250 + $0x90] sm:$0xff]
        %v315 = vld [vmem:[%s250 + $0x98] sm:$0xff]
        %v316 = vld [vmem:[%s250 + $0xa0] sm:$0xff]
        %v317 = vld [vmem:[%s250 + $0xa8] sm:$0xff]
        %v318 = vld [vmem:[%s250 + $0xb0] sm:$0xff]
        %v319 = vld [vmem:[%s250 + $0xb8] sm:$0xff]
        %v320 = vld [vmem:[%s250 + $0xc0] sm:$0xff]
        %v321 = vld [vmem:[%s250 + $0xc8] sm:$0xff]
        %v322 = vld [vmem:[%s250 + $0xd0] sm:$0xff]
        %v323 = vld [vmem:[%s250 + $0xd8] sm:$0xff]
        %v324 = vld [vmem:[%s250 + $0xe0] sm:$0xff]
        %v325 = vld [vmem:[%s250 + $0xe8] sm:$0xff]
        %v326 = vld [vmem:[%s250 + $0xf0] sm:$0xff]
        %v327 = vld [vmem:[%s250 + $0xf8] sm:$0xff]
        %v328 = vld [vmem:[%s259] sm:$0xff]
        %v329 = vld [vmem:[%s259 + $0x8] sm:$0xff]
        %v330 = vld [vmem:[%s259 + $0x10] sm:$0xff]
        %v331 = vld [vmem:[%s259 + $0x18] sm:$0xff]
        %v332 = vld [vmem:[%s259 + $0x20] sm:$0xff]
        %v333 = vld [vmem:[%s259 + $0x28] sm:$0xff]
        %v334 = vld [vmem:[%s259 + $0x30] sm:$0xff]
        %v335 = vld [vmem:[%s259 + $0x38] sm:$0xff]
        %v336 = vld [vmem:[%s259 + $0x40] sm:$0xff]
        %v337 = vld [vmem:[%s259 + $0x48] sm:$0xff]
        %v338 = vld [vmem:[%s259 + $0x50] sm:$0xff]
        %v339 = vld [vmem:[%s259 + $0x58] sm:$0xff]
        %v340 = vld [vmem:[%s259 + $0x60] sm:$0xff]
        %v341 = vld [vmem:[%s259 + $0x68] sm:$0xff]
        %v342 = vld [vmem:[%s259 + $0x70] sm:$0xff]
        %v343 = vld [vmem:[%s259 + $0x78] sm:$0xff]
        %v344 = vld [vmem:[%s259 + $0x80] sm:$0xff]
        %v345 = vld [vmem:[%s259 + $0x88] sm:$0xff]
        %v346 = vld [vmem:[%s259 + $0x90] sm:$0xff]
        %v347 = vld [vmem:[%s259 + $0x98] sm:$0xff]
        %v348 = vld [vmem:[%s259 + $0xa0] sm:$0xff]
        %v349 = vld [vmem:[%s259 + $0xa8] sm:$0xff]
        %v350 = vld [vmem:[%s259 + $0xb0] sm:$0xff]
        %v351 = vld [vmem:[%s259 + $0xb8] sm:$0xff]
        %v352 = vld [vmem:[%s259 + $0xc0] sm:$0xff]
        %v353 = vld [vmem:[%s259 + $0xc8] sm:$0xff]
        %v354 = vld [vmem:[%s259 + $0xd0] sm:$0xff]
        %v355 = vld [vmem:[%s259 + $0xd8] sm:$0xff]
        %v356 = vld [vmem:[%s259 + $0xe0] sm:$0xff]
        %v357 = vld [vmem:[%s259 + $0xe8] sm:$0xff]
        %v358 = vld [vmem:[%s259 + $0xf0] sm:$0xff]
        %v359 = vld [vmem:[%s259 + $0xf8] sm:$0xff]
        %v360 = vld [vmem:[%s2] sm:$0xff]
        %v361 = vld [vmem:[%s2 + $0x8] sm:$0xff]
        %v362 = vld [vmem:[#allocation7] sm:$0xff]
        %v363 = vld [vmem:[%s4] sm:$0xff]
        %v364 = vpack.c.bf16 %v360, %v360
        %v365 = vpack.c.bf16 %v361, %v361
        %v366 = vpack.c.bf16 %v297, %v296
        %v367 = vpack.c.bf16 %v299, %v298
        %v368 = vpack.c.bf16 %v301, %v300
        %v369 = vpack.c.bf16 %v303, %v302
        %v370 = vpack.c.bf16 %v305, %v304
        %v371 = vpack.c.bf16 %v307, %v306
        %v372 = vpack.c.bf16 %v309, %v308
        %v373 = vpack.c.bf16 %v311, %v310
        %v374 = vpack.c.bf16 %v313, %v312
        %v375 = vpack.c.bf16 %v315, %v314
        %v376 = vpack.c.bf16 %v317, %v316
        %v377 = vpack.c.bf16 %v319, %v318
        %v378 = vpack.c.bf16 %v321, %v320
        %v379 = vpack.c.bf16 %v323, %v322
        %v380 = vpack.c.bf16 %v325, %v324
        %v381 = vpack.c.bf16 %v327, %v326
        %383 = vset.pattern.permute.xlu0 0
        %384 = vperm.xlu0 %383, %v363
        %v385 = vpop.permute.xlu0 %384
        %387 = vmatprep.subr.bf16.mxu0 0
        %388 = vmatpush1.bf16.msra.mxu0 %v366
        %389 = vmatprep.subr.bf16.mxu0 0
        %390 = vmatpush1.bf16.msra.mxu0 %v367
        %391 = vmatprep.subr.bf16.mxu0 0
        %392 = vmatpush1.bf16.msra.mxu0 %v368
        %393 = vmatprep.subr.bf16.mxu0 0
        %394 = vmatpush1.bf16.msra.mxu0 %v369
        %395 = vmatprep.subr.bf16.mxu0 0
        %396 = vmatpush1.bf16.msra.mxu0 %v370
        %397 = vmatprep.subr.bf16.mxu0 0
        %398 = vmatpush1.bf16.msra.mxu0 %v371
        %399 = vmatprep.subr.bf16.mxu0 0
        %400 = vmatpush1.bf16.msra.mxu0 %v372
        %401 = vmatprep.subr.bf16.mxu0 0
        %402 = vmatpush1.bf16.msra.mxu0 %v373
        %403 = vmatprep.subr.bf16.mxu0 0
        %404 = vmatpush1.bf16.msra.mxu0 %v374
        %405 = vmatprep.subr.bf16.mxu0 0
        %406 = vmatpush1.bf16.msra.mxu0 %v375
        %407 = vmatprep.subr.bf16.mxu0 0
        %408 = vmatpush1.bf16.msra.mxu0 %v376
        %409 = vmatprep.subr.bf16.mxu0 0
        %410 = vmatpush1.bf16.msra.mxu0 %v377
        %411 = vmatprep.subr.bf16.mxu0 0
        %412 = vmatpush1.bf16.msra.mxu0 %v378
        %413 = vmatprep.subr.bf16.mxu0 0
        %414 = vmatpush1.bf16.msra.mxu0 %v379
        %415 = vmatprep.subr.bf16.mxu0 0
        %416 = vmatpush1.bf16.msra.mxu0 %v380
        %417 = vmatprep.subr.bf16.mxu0 0
        %418 = vmatpush1.bf16.msra.mxu0 %v381
        %419 = vmatprep.mubr.bf16.mxu0 %v365
        %420 = vmatmul.mubr.bf16.gmra.mrb[0].mxu0 %v364
        %v421 = vpop.f32.mrb[0].mxu0
        %v422 = vadd.f32 %v385, %v421
        %v423 = vpop.f32.mrb[0].mxu0
        %v424 = vpop.f32.mrb[0].mxu0
        %v425 = vpop.f32.mrb[0].mxu0
        %426 = vdwg.mxu0
        %v427 = vrot.slane %v422, 4
        %v428 = vmax.f32 %v422, %v427
        %v429 = vrot.slane %v428, 2
        %v430 = vmax.f32 %v428, %v429
        %v431 = vrot.slane %v430, 1
        %v432 = vmax.f32 %v430, %v431
        %v433 = vsub.f32 %v422, %v432
        %v434 = vmul.f32 %v433, 1.442695
        %v435 = vpow.pop %v434
        %v436 = vrot.slane %v435, 4
        %v437 = vadd.f32 %v435, %v436
        %v438 = vrot.slane %v437, 2
        %v439 = vadd.f32 %v437, %v438
        %v440 = vrot.slane %v439, 1
        %v441 = vadd.f32 %v439, %v440
        %v442 = vrcp.pop %v441
        %v443 = vmul.f32 1.0, %v442
        %v444 = vmul.f32 %v435, %v443
        %v445 = vmul.f32 %v328, %v328
        %v446 = vmul.f32 %v329, %v329
        %v447 = vmul.f32 %v330, %v330
        %v448 = vmul.f32 %v331, %v331
        %v449 = vmul.f32 %v332, %v332
        %v450 = vmul.f32 %v333, %v333
        %v451 = vmul.f32 %v334, %v334
        %v452 = vmul.f32 %v335, %v335
        %v453 = vmul.f32 %v336, %v336
        %v454 = vmul.f32 %v337, %v337
        %v455 = vmul.f32 %v338, %v338
        %v456 = vmul.f32 %v339, %v339
        %v457 = vmul.f32 %v340, %v340
        %v458 = vmul.f32 %v341, %v341
        %v459 = vmul.f32 %v342, %v342
        %v460 = vmul.f32 %v343, %v343
        %v461 = vmul.f32 %v344, %v344
        %v462 = vmul.f32 %v345, %v345
        %v463 = vmul.f32 %v346, %v346
        %v464 = vmul.f32 %v347, %v347
        %v465 = vmul.f32 %v348, %v348
        %v466 = vmul.f32 %v349, %v349
        %v467 = vmul.f32 %v350, %v350
        %v468 = vmul.f32 %v351, %v351
        %v469 = vmul.f32 %v352, %v352
        %v470 = vmul.f32 %v353, %v353
        %v471 = vmul.f32 %v354, %v354
        %v472 = vmul.f32 %v355, %v355
        %v473 = vmul.f32 %v356, %v356
        %v474 = vmul.f32 %v357, %v357
        %v475 = vmul.f32 %v358, %v358
        %v476 = vmul.f32 %v359, %v359
        %477 = vadd.xlane.f32.xlu0 %v445
        %v478 = vpop.xlane.xlu0 %477
        %479 = vadd.xlane.f32.xlu0 %v446
        %v480 = vpop.xlane.xlu0 %479
        %481 = vadd.xlane.f32.xlu0 %v447
        %v482 = vpop.xlane.xlu0 %481
        %483 = vadd.xlane.f32.xlu0 %v448
        %v484 = vpop.xlane.xlu0 %483
        %485 = vadd.xlane.f32.xlu0 %v449
        %v486 = vpop.xlane.xlu0 %485
        %487 = vadd.xlane.f32.xlu0 %v450
        %v488 = vpop.xlane.xlu0 %487
        %489 = vadd.xlane.f32.xlu0 %v451
        %v490 = vpop.xlane.xlu0 %489
        %491 = vadd.xlane.f32.xlu0 %v452
        %v492 = vpop.xlane.xlu0 %491
        %493 = vadd.xlane.f32.xlu0 %v453
        %v494 = vpop.xlane.xlu0 %493
        %495 = vadd.xlane.f32.xlu0 %v454
        %v496 = vpop.xlane.xlu0 %495
        %497 = vadd.xlane.f32.xlu0 %v455
        %v498 = vpop.xlane.xlu0 %497
        %499 = vadd.xlane.f32.xlu0 %v456
        %v500 = vpop.xlane.xlu0 %499
        %501 = vadd.xlane.f32.xlu0 %v457
        %v502 = vpop.xlane.xlu0 %501
        %503 = vadd.xlane.f32.xlu0 %v458
        %v504 = vpop.xlane.xlu0 %503
        %505 = vadd.xlane.f32.xlu0 %v459
        %v506 = vpop.xlane.xlu0 %505
        %507 = vadd.xlane.f32.xlu0 %v460
        %v508 = vpop.xlane.xlu0 %507
        %509 = vadd.xlane.f32.xlu0 %v461
        %v510 = vpop.xlane.xlu0 %509
        %511 = vadd.xlane.f32.xlu0 %v462
        %v512 = vpop.xlane.xlu0 %511
        %513 = vadd.xlane.f32.xlu0 %v463
        %v514 = vpop.xlane.xlu0 %513
        %515 = vadd.xlane.f32.xlu0 %v464
        %v516 = vpop.xlane.xlu0 %515
        %517 = vadd.xlane.f32.xlu0 %v465
        %v518 = vpop.xlane.xlu0 %517
        %519 = vadd.xlane.f32.xlu0 %v466
        %v520 = vpop.xlane.xlu0 %519
        %521 = vadd.xlane.f32.xlu0 %v467
        %v522 = vpop.xlane.xlu0 %521
        %523 = vadd.xlane.f32.xlu0 %v468
        %v524 = vpop.xlane.xlu0 %523
        %525 = vadd.xlane.f32.xlu0 %v469
        %v526 = vpop.xlane.xlu0 %525
        %527 = vadd.xlane.f32.xlu0 %v470
        %v528 = vpop.xlane.xlu0 %527
        %529 = vadd.xlane.f32.xlu0 %v471
        %v530 = vpop.xlane.xlu0 %529
        %531 = vadd.xlane.f32.xlu0 %v472
        %v532 = vpop.xlane.xlu0 %531
        %533 = vadd.xlane.f32.xlu0 %v473
        %v534 = vpop.xlane.xlu0 %533
        %535 = vadd.xlane.f32.xlu0 %v474
        %v536 = vpop.xlane.xlu0 %535
        %537 = vadd.xlane.f32.xlu0 %v475
        %v538 = vpop.xlane.xlu0 %537
        %539 = vadd.xlane.f32.xlu0 %v476
        %v540 = vpop.xlane.xlu0 %539
        %v541 = vadd.f32 %v478, %v480
        %v542 = vadd.f32 %v541, %v482
        %v543 = vadd.f32 %v542, %v484
        %v544 = vadd.f32 %v543, %v486
        %v545 = vadd.f32 %v544, %v488
        %v546 = vadd.f32 %v545, %v490
        %v547 = vadd.f32 %v546, %v492
        %v548 = vadd.f32 %v547, %v494
        %v549 = vadd.f32 %v548, %v496
        %v550 = vadd.f32 %v549, %v498
        %v551 = vadd.f32 %v550, %v500
        %v552 = vadd.f32 %v551, %v502
        %v553 = vadd.f32 %v552, %v504
        %v554 = vadd.f32 %v553, %v506
        %v555 = vadd.f32 %v554, %v508
        %v556 = vadd.f32 %v555, %v510
        %v557 = vadd.f32 %v556, %v512
        %v558 = vadd.f32 %v557, %v514
        %v559 = vadd.f32 %v558, %v516
        %v560 = vadd.f32 %v559, %v518
        %v561 = vadd.f32 %v560, %v520
        %v562 = vadd.f32 %v561, %v522
        %v563 = vadd.f32 %v562, %v524
        %v564 = vadd.f32 %v563, %v526
        %v565 = vadd.f32 %v564, %v528
        %v566 = vadd.f32 %v565, %v530
        %v567 = vadd.f32 %v566, %v532
        %v568 = vadd.f32 %v567, %v534
        %v569 = vadd.f32 %v568, %v536
        %v570 = vadd.f32 %v569, %v538
        %v571 = vadd.f32 %v570, %v540
        %v572 = vrot.slane %v571, 4
        %v573 = vadd.f32 %v571, %v572
        %v574 = vrot.slane %v573, 2
        %v575 = vadd.f32 %v573, %v574
        %v576 = vrot.slane %v575, 1
        %v577 = vadd.f32 %v575, %v576
        %v578 = vrsqrt.pop %v577
        %v579 = vmul.f32 %v577, %v578
        %vm580 = vcmp.eq.f32.partialorder %v577, inf
        %v581 = vsel %vm580, %v577, %v579
        %vm582 = vcmp.eq.f32.partialorder %v577, 0.0
        %v583 = vand.u32 %v577, 2147483648
        %v584 = vsel %vm582, %v583, %v581
        %v585 = vadd.f32 %v584, 1e-08
        %v586 = vrcp.pop %v585
        %v587 = vmul.f32 1.0, %v586
        %v588 = vpack.c.bf16 %v329, %v328
        %v589 = vpack.c.bf16 %v331, %v330
        %v590 = vpack.c.bf16 %v333, %v332
        %v591 = vpack.c.bf16 %v335, %v334
        %v592 = vpack.c.bf16 %v337, %v336
        %v593 = vpack.c.bf16 %v339, %v338
        %v594 = vpack.c.bf16 %v341, %v340
        %v595 = vpack.c.bf16 %v343, %v342
        %v596 = vpack.c.bf16 %v345, %v344
        %v597 = vpack.c.bf16 %v347, %v346
        %v598 = vpack.c.bf16 %v349, %v348
        %v599 = vpack.c.bf16 %v351, %v350
        %v600 = vpack.c.bf16 %v353, %v352
        %v601 = vpack.c.bf16 %v355, %v354
        %v602 = vpack.c.bf16 %v357, %v356
        %v603 = vpack.c.bf16 %v359, %v358
        %604 = vmatprep.subr.bf16.mxu0 0
        %605 = vmatpush1.bf16.msra.mxu0 %v588
        %606 = vmatprep.subr.bf16.mxu0 0
        %607 = vmatpush1.bf16.msra.mxu0 %v589
        %608 = vmatprep.subr.bf16.mxu0 0
        %609 = vmatpush1.bf16.msra.mxu0 %v590
        %610 = vmatprep.subr.bf16.mxu0 0
        %611 = vmatpush1.bf16.msra.mxu0 %v591
        %612 = vmatprep.subr.bf16.mxu0 0
        %613 = vmatpush1.bf16.msra.mxu0 %v592
        %614 = vmatprep.subr.bf16.mxu0 0
        %615 = vmatpush1.bf16.msra.mxu0 %v593
        %616 = vmatprep.subr.bf16.mxu0 0
        %617 = vmatpush1.bf16.msra.mxu0 %v594
        %618 = vmatprep.subr.bf16.mxu0 0
        %619 = vmatpush1.bf16.msra.mxu0 %v595
        %620 = vmatprep.subr.bf16.mxu0 0
        %621 = vmatpush1.bf16.msra.mxu0 %v596
        %622 = vmatprep.subr.bf16.mxu0 0
        %623 = vmatpush1.bf16.msra.mxu0 %v597
        %624 = vmatprep.subr.bf16.mxu0 0
        %625 = vmatpush1.bf16.msra.mxu0 %v598
        %626 = vmatprep.subr.bf16.mxu0 0
        %627 = vmatpush1.bf16.msra.mxu0 %v599
        %628 = vmatprep.subr.bf16.mxu0 0
        %629 = vmatpush1.bf16.msra.mxu0 %v600
        %630 = vmatprep.subr.bf16.mxu0 0
        %631 = vmatpush1.bf16.msra.mxu0 %v601
        %632 = vmatprep.subr.bf16.mxu0 0
        %633 = vmatpush1.bf16.msra.mxu0 %v602
        %634 = vmatprep.subr.bf16.mxu0 0
        %635 = vmatpush1.bf16.msra.mxu0 %v603
        %636 = vmatprep.mubr.bf16.mxu0 %v365
        %637 = vmatmul.mubr.bf16.gmra.mrb[0].mxu0 %v364
        %v638 = vpop.f32.mrb[0].mxu0
        %v639 = vadd.f32 0.0, %v638
        %v640 = vpop.f32.mrb[0].mxu0
        %v641 = vpop.f32.mrb[0].mxu0
        %v642 = vpop.f32.mrb[0].mxu0
        %643 = vdwg.mxu0
        %v644 = vmul.f32 %v639, %v587
        %v645 = vmul.f32 %v644, 0.1
        %v646 = vadd.f32 %v422, %v645
        %v647 = vrot.slane %v646, 4
        %v648 = vmax.f32 %v646, %v647
        %v649 = vrot.slane %v648, 2
        %v650 = vmax.f32 %v648, %v649
        %v651 = vrot.slane %v650, 1
        %v652 = vmax.f32 %v650, %v651
        %v653 = vsub.f32 %v646, %v652
        %v654 = vmul.f32 %v653, 1.442695
        %v655 = vpow.pop %v654
        %v656 = vrot.slane %v655, 4
        %v657 = vadd.f32 %v655, %v656
        %v658 = vrot.slane %v657, 2
        %v659 = vadd.f32 %v657, %v658
        %v660 = vrot.slane %v659, 1
        %v661 = vadd.f32 %v659, %v660
        %v662 = vrcp.pop %v661
        %v663 = vmul.f32 1.0, %v662
        %v664 = vmul.f32 %v655, %v663
        %v665 = vsub.f32 %v664, %v444
        %vm666 = vcmask 64512
        %v668 = vsel %vm666, %v362, 0
        %670 = vmatprep.subr.mxu0 0.0
        %671 = vmatpush1.msra.mxu0 %v665
        %672 = vmatprep.subr.mxu0 0.0
        %673 = vmatpush1.msra.mxu0 0.0
        %674 = vmatprep.subr.mxu0 0.0
        %675 = vmatpush1.msra.mxu0 0.0
        %676 = vmatprep.subr.mxu0 0.0
        %677 = vmatpush1.msra.mxu0 0.0
        %678 = vmatprep.subr.mxu0 0.0
        %679 = vmatpush1.msra.mxu0 0.0
        %680 = vmatprep.subr.mxu0 0.0
        %681 = vmatpush1.msra.mxu0 0.0
        %682 = vmatprep.subr.mxu0 0.0
        %683 = vmatpush1.msra.mxu0 0.0
        %684 = vmatprep.subr.mxu0 0.0
        %685 = vmatpush1.msra.mxu0 0.0
        %686 = vmatprep.subr.mxu0 0.0
        %687 = vmatpush1.msra.mxu0 0.0
        %688 = vmatprep.subr.mxu0 0.0
        %689 = vmatpush1.msra.mxu0 0.0
        %690 = vmatprep.subr.mxu0 0.0
        %691 = vmatpush1.msra.mxu0 0.0
        %692 = vmatprep.subr.mxu0 0.0
        %693 = vmatpush1.msra.mxu0 0.0
        %694 = vmatprep.subr.mxu0 0.0
        %695 = vmatpush1.msra.mxu0 0.0
        %696 = vmatprep.subr.mxu0 0.0
        %697 = vmatpush1.msra.mxu0 0.0
        %698 = vmatprep.subr.mxu0 0.0
        %699 = vmatpush1.msra.mxu0 0.0
        %700 = vmatprep.subr.mxu0 0.0
        %701 = vmatpush1.msra.mxu0 0.0
        %702 = vmatprep.subr.mxu0 0.0
        %703 = vmatpush1.msra.mxu0 0.0
        %704 = vmatprep.subr.mxu0 0.0
        %705 = vmatpush1.msra.mxu0 0.0
        %706 = vmatprep.subr.mxu0 0.0
        %707 = vmatpush1.msra.mxu0 0.0
        %708 = vmatprep.subr.mxu0 0.0
        %709 = vmatpush1.msra.mxu0 0.0
        %710 = vmatprep.subr.mxu0 0.0
        %711 = vmatpush1.msra.mxu0 0.0
        %712 = vmatprep.subr.mxu0 0.0
        %713 = vmatpush1.msra.mxu0 0.0
        %714 = vmatprep.subr.mxu0 0.0
        %715 = vmatpush1.msra.mxu0 0.0
        %716 = vmatprep.subr.mxu0 0.0
        %717 = vmatpush1.msra.mxu0 0.0
        %718 = vmatprep.subr.mxu0 0.0
        %719 = vmatpush1.msra.mxu0 0.0
        %720 = vmatprep.subr.mxu0 0.0
        %721 = vmatpush1.msra.mxu0 0.0
        %722 = vmatprep.subr.mxu0 0.0
        %723 = vmatpush1.msra.mxu0 0.0
        %724 = vmatprep.subr.mxu0 0.0
        %725 = vmatpush1.msra.mxu0 0.0
        %726 = vmatprep.subr.mxu0 0.0
        %727 = vmatpush1.msra.mxu0 0.0
        %728 = vmatprep.subr.mxu0 0.0
        %729 = vmatpush1.msra.mxu0 0.0
        %730 = vmatprep.subr.mxu0 0.0
        %731 = vmatpush1.msra.mxu0 0.0
        %732 = vmatprep.subr.mxu0 0.0
        %733 = vmatpush1.msra.mxu0 0.0
        %734 = vmatprep.mubr.f32.mxu0 0.0
        %735 = vmatmul.mubr.f32.gmra.mrb[0].mxu0 %v668
        %v736 = vpop.f32.mrb[0].mxu0
        %v737 = vadd.f32 0.0, %v736
        %v738 = vpop.f32.mrb[0].mxu0
        %739 = vdwg.mxu0
        %v740 = vmul.f32 %v665, %v737
        %741 = vadd.xlane.f32.xlu0 %v740
        %v742 = vpop.xlane.xlu0 %741
        %v743 = vrot.slane %v742, 4
        %v744 = vadd.f32 %v742, %v743
        %v745 = vrot.slane %v744, 2
        %v746 = vadd.f32 %v744, %v745
        %v747 = vrot.slane %v746, 1
        %v748 = vadd.f32 %v746, %v747
        %v749 = vmax.f32 %v748, 0.0
        %v750 = vrsqrt.pop %v749
        %v751 = vmul.f32 %v749, %v750
        %vm752 = vcmp.eq.f32.partialorder %v749, inf
        %v753 = vsel %vm752, %v749, %v751
        %vm754 = vcmp.eq.f32.partialorder %v749, 0.0
        %v755 = vand.u32 %v749, 2147483648
        %v756 = vsel %vm754, %v755, %v753
        %v757 = vadd.f32 %v756, 1e-08
        %v758 = vrcp.pop %v757
        %v759 = vmul.f32 1.0, %v758
        %v760 = vmul.f32 %v737, %v759
        %v761 = vmul.f32 %v760, 10.0
        %v762 = vadd.f32 %v422, %v761
        %763 = vst [vmem:[%s294] sm:$0xff] %v762
        %s764 = sand.u32 %s148, 1
        %s765 = scalar_lea.sflag [#allocation4], %s764
        %s766 = sand.u32 %s148, 1
        %s767 = smul.addr %s766, 8
        %s768 = scalar_lea.vmem [#allocation8], %s767
        // Predicated region
        $region53: #{tpu_custom_call.1} parent=39 // pred_check
          %p769 = pneg %p158
        $region54: #{tpu_custom_call.1} parent=39 // pred_check_branch
          %771 = sbr.rel (%p769) target = $region56
        $region55: #{tpu_custom_call.1} parent=39 // pred_region
          %s773 = ssub.s32 128, 128
          %774 = vsyncadd %s765, %s773
          %s775 = smul.addr %s25, 128
          %s776 = scalar_lea.hbm %s5, %s775
          %s778 = sshll.u32 %s768, 4
          %s779 = int_to_ptr.vmem [resolvable:$true] %s778
          %781 = dma.vmem_to_hbm [thread:$0]  %s779, 128, %s776, %s765
        $region56: #{tpu_custom_call.1} parent=39 // pred_fallthru
          _
      $region40: #{tpu_custom_call.1} parent=5 // pred_fallthru
        _
      %p782 = scmp.le.s32.totalorder 2, %s20
      // Predicated region
      $region57: #{tpu_custom_call.1} parent=5 // pred_check
        %p783 = pneg %p782
      $region58: #{tpu_custom_call.1} parent=5 // pred_check_branch
        %785 = sbr.rel (%p783) target = $region60
      $region59: #{tpu_custom_call.1} parent=5 // pred_region
        %s786 = ssub.s32 %s20, 2
        // Predicated region
        $region61: #{tpu_custom_call.1} parent=59 // pred_check
          %p787 = pneg %p164
        $region62: #{tpu_custom_call.1} parent=59 // pred_check_branch
          %789 = sbr.rel (%p787) target = $region64
        $region63: #{tpu_custom_call.1} parent=59 // pred_region
          %s790 = sand.u32 %s149, 1
          %s791 = scalar_lea.sflag [#allocation4], %s790
          %s792 = sand.u32 %s149, 1
          %s793 = smul.addr %s792, 8
          %s794 = scalar_lea.vmem [#allocation8], %s793
          %795 = dma.done %s791, 128
        $region64: #{tpu_custom_call.1} parent=59 // pred_fallthru
          _
      $region60: #{tpu_custom_call.1} parent=5 // pred_fallthru
        _
    $region6: #{tpu_custom_call.1} parent=1 // loop_footer
      %s24 = sadd.s32 1, %s20
    $region7: #{tpu_custom_call.1} parent=1 // loop_footer_branch
      %19 = sbr.rel target = $region3
    $region8: #{tpu_custom_call.1} parent=1 // loop_exit
      _
    %796 = vsyncpa [#allocation3], 1
    %s797 = scalar_lea.sflag [#allocation3], 1
    %798 = vsyncpa %s797, 1
    %799 = vsyncpa [#allocation6], 1
    %s800 = scalar_lea.sflag [#allocation6], 1
    %801 = vsyncpa %s800, 1
    %802 = vsyncpa [#allocation4], 1
    %s803 = scalar_lea.sflag [#allocation4], 1
    %804 = vsyncpa %s803, 1

</llo_original>
